<compile_context>
chip_gen: v5e
topology: v5e:2x2
jax: 0.10.0
libtpu: 0.0.40
codegen_flags: <defaults>
</compile_context>

<pallas_src>
import functools

import jax
import jax.numpy as jnp
from jax.experimental import pallas as pl
from jax.experimental.pallas import tpu as pltpu

F_PAD = 128    # lane-dense feature slab width (all layers)
F_HALF = 64    # lanes [0:64) hold h_self features, lanes [64:128) hold h_neigh
N_ALIGN = 128  # node-slab alignment (MXU K / lane width)


def _fused_sage_kernel(num_layers, a_ref, x_ref, w_ref, b_ref, o_ref):
    """Fused L-layer SAGE forward, everything resident in VMEM.

    a_ref : (L, N, N)         zero-padded row-normalized adjacencies (dst x src)
    x_ref : (N, F_PAD)        padded input features (features in lanes [0, in))
    w_ref : (L, F_PAD, F_PAD) packed weights: rows [0:64) = W_self (zero-padded),
                              rows [64:128) = W_neigh (zero-padded)
    b_ref : (L, 1, F_PAD)     per-layer bias (zero-padded)
    o_ref : (n_out, F_PAD)    final dst-node features (padded lanes)
    """
    h = x_ref[...]                                     # (N, F_PAD)
    n_out = o_ref.shape[0]
    for l in range(num_layers):                        # static -> fully unrolled
        # Mean neighbor aggregation on the MXU (K = 128, lane-dense).  Padded
        # A columns are zero so stale rows of the h slab never contribute.
        h_neigh = jnp.dot(a_ref[l], h, preferred_element_type=jnp.float32)
        # Pack [h_self | h_neigh] into ONE 128-lane slab: h keeps its features
        # in lanes [0:64) (lanes [64:128) are exactly zero by construction);
        # the XLU roll moves h_neigh's features into lanes [64:128).  The add
        # is exact because the complementary halves are zero.
        packed = h + pltpu.roll(h_neigh, shift=F_HALF, axis=1)
        # Single K=128 projection: packed @ [W_self ; W_neigh] + bias.
        h = jnp.dot(packed, w_ref[l], preferred_element_type=jnp.float32) + b_ref[l]
        if l != num_layers - 1:
            h = jnp.maximum(h, 0.0)   # ReLU; dropout is identity in eval mode
    o_ref[...] = h[:n_out, :].astype(o_ref.dtype)


def _pad2d(a, rows, cols):
    return jnp.pad(a, ((0, rows - a.shape[0]), (0, cols - a.shape[1])))


def _round_up(n, m):
    return ((n + m - 1) // m) * m


def sage_forward(blocks, x, params):
    """Full SAGE.forward as one fused, gridless pallas_call."""
    num_layers = len(params)
    assert len(blocks) == num_layers
    out_size = int(params[-1]["w_self"].shape[1])
    n_out = int(blocks[-1].shape[0])

    # Half-slab packing requires every feature width <= 64.
    assert x.shape[1] <= F_HALF, "in_size must be <= 64 for half-slab packing"
    for p in params:
        assert p["w_self"].shape[0] <= F_HALF and p["w_self"].shape[1] <= F_HALF

    # Node slab: adjacencies / activations live on a lane-dense node axis
    # padded to a multiple of 128 so every MXU pass is K=128-aligned and every
    # load/store is unmasked.
    max_nodes = max(
        [int(x.shape[0])]
        + [int(a.shape[0]) for a in blocks]
        + [int(a.shape[1]) for a in blocks]
    )
    n_slab = _round_up(max_nodes, N_ALIGN)

    a_pad = jnp.stack([_pad2d(a, n_slab, n_slab) for a in blocks], axis=0)
    x_p = _pad2d(x, n_slab, F_PAD)
    # Packed per-layer weights: one (128, 128) slab per layer, W_self in rows
    # [0:64), W_neigh in rows [64:128) -> half the HBM bytes of a K=256 stack.
    w_cat = jnp.stack(
        [
            jnp.concatenate(
                [
                    _pad2d(p["w_self"], F_HALF, F_PAD),
                    _pad2d(p["w_neigh"], F_HALF, F_PAD),
                ],
                axis=0,
            )
            for p in params
        ],
        axis=0,
    )  # (L, F_PAD, F_PAD)
    b_cat = jnp.stack(
        [_pad2d(p["bias"].reshape(1, -1), 1, F_PAD) for p in params], axis=0
    )  # (L, 1, F_PAD)

    kernel = functools.partial(_fused_sage_kernel, num_layers)

    # Gridless call: full arrays as single-buffered VMEM refs (no pipeline
    # bookkeeping, no useless double-buffering under a size-1 grid).
    vmem_spec = pl.BlockSpec(memory_space=pltpu.MemorySpace.VMEM)
    out_padded = pl.pallas_call(
        kernel,
        out_shape=jax.ShapeDtypeStruct((n_out, F_PAD), jnp.float32),
        in_specs=[vmem_spec, vmem_spec, vmem_spec, vmem_spec],
        out_specs=vmem_spec,
    )(a_pad, x_p, w_cat, b_cat)

    # Drop the zero-padded lanes of the (tiny) final output.
    return out_padded[:, :out_size]


def _reference_forward(blocks, x, params):
    """Pure-JAX fp32 reference for correctness checking."""
    h = x
    for layer_idx, (a_norm, p) in enumerate(zip(blocks, params)):
        n_dst = a_norm.shape[0]
        h_neigh = a_norm @ h
        out = h[:n_dst] @ p["w_self"] + h_neigh @ p["w_neigh"] + p["bias"]
        if layer_idx != len(params) - 1:
            out = jnp.maximum(out, 0.0)
        h = out
    return h


def _make_block(key, n_dst, n_src):
    """Random bipartite block as a row-normalized dense adjacency (mean agg)."""
    mask = (jax.random.uniform(key, (n_dst, n_src)) < 0.3).astype(jnp.float32)
    # Guarantee at least one neighbor per dst node (self edge), like sampled blocks.
    eye = jnp.zeros((n_dst, n_src)).at[jnp.arange(n_dst), jnp.arange(n_dst)].set(1.0)
    mask = jnp.maximum(mask, eye)
    deg = jnp.sum(mask, axis=1, keepdims=True)
    return mask / deg


def _init_sage_params(key, in_size, hidden_size, out_size):
    dims = [(in_size, hidden_size), (hidden_size, hidden_size), (hidden_size, out_size)]
    params = []
    for i, (fi, fo) in enumerate(dims):
        k1, k2, key = jax.random.split(jax.random.fold_in(key, i), 3)
        params.append({
            "w_self": 0.1 * jax.random.normal(k1, (fi, fo), jnp.float32),
            "w_neigh": 0.1 * jax.random.normal(k2, (fi, fo), jnp.float32),
            "bias": jnp.zeros((fo,), jnp.float32),
        })
    return params


if __name__ == "__main__":
    in_size, hidden_size, out_size = 16, 32, 8
    n0, n1, n2, n3 = 64, 48, 32, 16  # src->dst node counts per block

    root = jax.random.PRNGKey(0)
    k_x, k_b0, k_b1, k_b2, k_p = jax.random.split(root, 5)

    x = jax.random.normal(k_x, (n0, in_size), jnp.float32)
    blocks = [
        _make_block(k_b0, n1, n0),
        _make_block(k_b1, n2, n1),
        _make_block(k_b2, n3, n2),
    ]
    params = _init_sage_params(k_p, in_size, hidden_size, out_size)

    out = sage_forward(blocks, x, params)
    out = jax.block_until_ready(out)

    ref = _reference_forward(blocks, x, params)
    assert out.shape == (n3, out_size)
    assert jnp.allclose(out, ref, atol=1e-4, rtol=1e-4)

    print("KERNEL_OK")
</pallas_src>

<mosaic_0001>
module attributes {stable_mosaic.version = 11 : i64} {
  func.func @_fused_sage_kernel(%arg0: memref<3x128x128xf32, #tpu.memory_space<vmem>>, %arg1: memref<128x128xf32, #tpu.memory_space<vmem>>, %arg2: memref<3x128x128xf32, #tpu.memory_space<vmem>>, %arg3: memref<3x1x128xf32, #tpu.memory_space<vmem>>, %arg4: memref<16x128xf32, #tpu.memory_space<vmem>>) attributes {dimension_semantics = [], scalar_prefetch = 0 : i64, scratch_operands = 0 : i64, tpu.core_type = #tpu.core_type<tc>} {
    %c0 = arith.constant 0 : index
    %c0_0 = arith.constant 0 : index
    %0 = vector.load %arg1[%c0, %c0_0] : memref<128x128xf32, #tpu.memory_space<vmem>>, vector<128x128xf32>
    %c0_1 = arith.constant 0 : index
    %c0_2 = arith.constant 0 : index
    %c0_3 = arith.constant 0 : index
    %1 = vector.load %arg0[%c0_1, %c0_2, %c0_3] : memref<3x128x128xf32, #tpu.memory_space<vmem>>, vector<1x128x128xf32>
    %2 = vector.shape_cast %1 : vector<1x128x128xf32> to vector<128x128xf32>
    %cst = arith.constant dense<0.000000e+00> : vector<128x128xf32>
    %3 = tpu.matmul %2, %0, %cst {dimension_numbers = #tpu.dot_dimension_numbers<[1], [0], [0], [1], [0, 0, 1, 1], [], []>} : vector<128x128xf32>, vector<128x128xf32>, vector<128x128xf32> -> vector<128x128xf32>
    %c64_i32 = arith.constant 64 : i32
    %4 = tpu.dynamic_rotate %3 by %c64_i32 dim 1 : vector<128x128xf32>, i32 -> vector<128x128xf32>
    %5 = arith.addf %0, %4 : vector<128x128xf32>
    %c0_4 = arith.constant 0 : index
    %c0_5 = arith.constant 0 : index
    %c0_6 = arith.constant 0 : index
    %6 = vector.load %arg2[%c0_4, %c0_5, %c0_6] : memref<3x128x128xf32, #tpu.memory_space<vmem>>, vector<1x128x128xf32>
    %7 = vector.shape_cast %6 : vector<1x128x128xf32> to vector<128x128xf32>
    %cst_7 = arith.constant dense<0.000000e+00> : vector<128x128xf32>
    %8 = tpu.matmul %5, %7, %cst_7 {dimension_numbers = #tpu.dot_dimension_numbers<[1], [0], [0], [1], [0, 0, 1, 1], [], []>} : vector<128x128xf32>, vector<128x128xf32>, vector<128x128xf32> -> vector<128x128xf32>
    %c0_8 = arith.constant 0 : index
    %c0_9 = arith.constant 0 : index
    %c0_10 = arith.constant 0 : index
    %9 = vector.load %arg3[%c0_8, %c0_9, %c0_10] : memref<3x1x128xf32, #tpu.memory_space<vmem>>, vector<1x1x128xf32>
    %10 = vector.shape_cast %9 : vector<1x1x128xf32> to vector<1x128xf32>
    %11 = vector.broadcast %10 : vector<1x128xf32> to vector<128x128xf32>
    %12 = arith.addf %8, %11 : vector<128x128xf32>
    %cst_11 = arith.constant 0.000000e+00 : f32
    %13 = vector.broadcast %cst_11 : f32 to vector<128x128xf32>
    %14 = arith.maximumf %12, %13 : vector<128x128xf32>
    %c1 = arith.constant 1 : index
    %c0_12 = arith.constant 0 : index
    %c0_13 = arith.constant 0 : index
    %15 = vector.load %arg0[%c1, %c0_12, %c0_13] : memref<3x128x128xf32, #tpu.memory_space<vmem>>, vector<1x128x128xf32>
    %16 = vector.shape_cast %15 : vector<1x128x128xf32> to vector<128x128xf32>
    %cst_14 = arith.constant dense<0.000000e+00> : vector<128x128xf32>
    %17 = tpu.matmul %16, %14, %cst_14 {dimension_numbers = #tpu.dot_dimension_numbers<[1], [0], [0], [1], [0, 0, 1, 1], [], []>} : vector<128x128xf32>, vector<128x128xf32>, vector<128x128xf32> -> vector<128x128xf32>
    %c64_i32_15 = arith.constant 64 : i32
    %18 = tpu.dynamic_rotate %17 by %c64_i32_15 dim 1 : vector<128x128xf32>, i32 -> vector<128x128xf32>
    %19 = arith.addf %14, %18 : vector<128x128xf32>
    %c1_16 = arith.constant 1 : index
    %c0_17 = arith.constant 0 : index
    %c0_18 = arith.constant 0 : index
    %20 = vector.load %arg2[%c1_16, %c0_17, %c0_18] : memref<3x128x128xf32, #tpu.memory_space<vmem>>, vector<1x128x128xf32>
    %21 = vector.shape_cast %20 : vector<1x128x128xf32> to vector<128x128xf32>
    %cst_19 = arith.constant dense<0.000000e+00> : vector<128x128xf32>
    %22 = tpu.matmul %19, %21, %cst_19 {dimension_numbers = #tpu.dot_dimension_numbers<[1], [0], [0], [1], [0, 0, 1, 1], [], []>} : vector<128x128xf32>, vector<128x128xf32>, vector<128x128xf32> -> vector<128x128xf32>
    %c1_20 = arith.constant 1 : index
    %c0_21 = arith.constant 0 : index
    %c0_22 = arith.constant 0 : index
    %23 = vector.load %arg3[%c1_20, %c0_21, %c0_22] : memref<3x1x128xf32, #tpu.memory_space<vmem>>, vector<1x1x128xf32>
    %24 = vector.shape_cast %23 : vector<1x1x128xf32> to vector<1x128xf32>
    %25 = vector.broadcast %24 : vector<1x128xf32> to vector<128x128xf32>
    %26 = arith.addf %22, %25 : vector<128x128xf32>
    %cst_23 = arith.constant 0.000000e+00 : f32
    %27 = vector.broadcast %cst_23 : f32 to vector<128x128xf32>
    %28 = arith.maximumf %26, %27 : vector<128x128xf32>
    %c2 = arith.constant 2 : index
    %c0_24 = arith.constant 0 : index
    %c0_25 = arith.constant 0 : index
    %29 = vector.load %arg0[%c2, %c0_24, %c0_25] : memref<3x128x128xf32, #tpu.memory_space<vmem>>, vector<1x128x128xf32>
    %30 = vector.shape_cast %29 : vector<1x128x128xf32> to vector<128x128xf32>
    %cst_26 = arith.constant dense<0.000000e+00> : vector<128x128xf32>
    %31 = tpu.matmul %30, %28, %cst_26 {dimension_numbers = #tpu.dot_dimension_numbers<[1], [0], [0], [1], [0, 0, 1, 1], [], []>} : vector<128x128xf32>, vector<128x128xf32>, vector<128x128xf32> -> vector<128x128xf32>
    %c64_i32_27 = arith.constant 64 : i32
    %32 = tpu.dynamic_rotate %31 by %c64_i32_27 dim 1 : vector<128x128xf32>, i32 -> vector<128x128xf32>
    %33 = arith.addf %28, %32 : vector<128x128xf32>
    %c2_28 = arith.constant 2 : index
    %c0_29 = arith.constant 0 : index
    %c0_30 = arith.constant 0 : index
    %34 = vector.load %arg2[%c2_28, %c0_29, %c0_30] : memref<3x128x128xf32, #tpu.memory_space<vmem>>, vector<1x128x128xf32>
    %35 = vector.shape_cast %34 : vector<1x128x128xf32> to vector<128x128xf32>
    %cst_31 = arith.constant dense<0.000000e+00> : vector<128x128xf32>
    %36 = tpu.matmul %33, %35, %cst_31 {dimension_numbers = #tpu.dot_dimension_numbers<[1], [0], [0], [1], [0, 0, 1, 1], [], []>} : vector<128x128xf32>, vector<128x128xf32>, vector<128x128xf32> -> vector<128x128xf32>
    %c2_32 = arith.constant 2 : index
    %c0_33 = arith.constant 0 : index
    %c0_34 = arith.constant 0 : index
    %37 = vector.load %arg3[%c2_32, %c0_33, %c0_34] : memref<3x1x128xf32, #tpu.memory_space<vmem>>, vector<1x1x128xf32>
    %38 = vector.shape_cast %37 : vector<1x1x128xf32> to vector<1x128xf32>
    %39 = vector.broadcast %38 : vector<1x128xf32> to vector<128x128xf32>
    %40 = arith.addf %36, %39 : vector<128x128xf32>
    %41 = vector.extract_strided_slice %40 {offsets = [0, 0], sizes = [16, 128], strides = [1, 1]} : vector<128x128xf32> to vector<16x128xf32>
    %c0_35 = arith.constant 0 : index
    %c0_36 = arith.constant 0 : index
    %42 = vector.load %arg4[%c0_35, %c0_36] : memref<16x128xf32, #tpu.memory_space<vmem>>, vector<16x128xf32>
    tpu.vector_store %arg4[%c0_35, %c0_36], %41 {strides = array<i32>} : memref<16x128xf32, #tpu.memory_space<vmem>>, vector<16x128xf32>,
    return
  }
}

</mosaic_0001>

<llo_original>
// kernel: tpu_custom_call.1
$region0: #{tpu_custom_call.1}
  #allocation0 [shape = 'u32[]', space=smem, size = 0x4, offset = 0x4, fixed_abs, tag = 'smem constant byte address 0x4 - core index']
  #allocation1 [shape = 'u32[72,128]{1,0:T(1,128)}', space=vmem, size = 0x9000, scoped, tag = 'internal scratch']
  %s0 = inlined_call_operand.hbm [shape: f32[3,128,128], index: 0, kind: input, shape index: {}]
  %s1 = inlined_call_operand.hbm [shape: f32[128,128], index: 1, kind: input, shape index: {}]
  %s2 = inlined_call_operand.hbm [shape: f32[3,128,128], index: 2, kind: input, shape index: {}]
  %s3 = inlined_call_operand.hbm [shape: f32[3,1,128], index: 3, kind: input, shape index: {}]
  %s4 = inlined_call_operand.hbm [shape: f32[16,128], index: 4, kind: output, shape index: {}]
  %s5 = sld [smem:[#allocation0]]
  $region42: #{tpu_custom_call.1} parent=0
    _
  %s7 = ssub.s32 1, %s5
  %s8 = scalar_select 0, %s7, %s5
  $region1: #{tpu_custom_call.1} parent=0
    #allocation2 [shape = 'u8[196608]{0}', space=vmem, size = 0x30000, scoped, tag = 'input window, operand 0, single buffered']
    #allocation3 [shape = 's32[1]{0}', space=sflag, size = 0x4, scoped, tag = 'scoped memory for tpu_custom_call.1']
    #allocation4 [shape = 's32[1]{0}', space=sflag, size = 0x4, scoped, tag = 'scoped memory for tpu_custom_call.1']
    #allocation5 [shape = 'u8[65536]{0}', space=vmem, size = 0x10000, scoped, tag = 'input window, operand 1, single buffered']
    #allocation6 [shape = 's32[1]{0}', space=sflag, size = 0x4, scoped, tag = 'scoped memory for tpu_custom_call.1']
    #allocation7 [shape = 'u8[196608]{0}', space=vmem, size = 0x30000, scoped, tag = 'input window, operand 2, single buffered']
    #allocation8 [shape = 'u8[1536]{0}', space=vmem, size = 0x800, scoped, tag = 'input window, operand 3, single buffered']
    #allocation9 [shape = 's32[1]{0}', space=sflag, size = 0x4, scoped, tag = 'scoped memory for tpu_custom_call.1']
    #allocation10 [shape = 'u8[8192]{0}', space=vmem, size = 0x2000, scoped, tag = 'output window, operand 0, single buffered']
    %9 = vsyncpa [#allocation3], 0
    %10 = vsyncpa [#allocation6], 0
    %11 = vsyncpa [#allocation9], 0
    %12 = vsyncpa [#allocation4], 0
    // Predicated region
    $region2: #{tpu_custom_call.1} parent=1 // pred_check
      _
    $region3: #{tpu_custom_call.1} parent=1 // pred_check_branch
      %14 = sbr.rel (0) target = $region5
    $region4: #{tpu_custom_call.1} parent=1 // pred_region
      %16 = vsyncadd [#allocation3], 0
      %s17 = sshll.u32 %s0, 4
      %s18 = int_to_ptr.hbm [resolvable:$true] %s17
      %s19 = sshll.u32 [#allocation2], 4
      %s20 = int_to_ptr.vmem [resolvable:$true] %s19
      %25 = dma.hbm_to_vmem [thread:$0]  %s18, 6144, %s20, [#allocation3], 128, 128, 8
    $region5: #{tpu_custom_call.1} parent=1 // pred_fallthru
      _
    // Predicated region
    $region6: #{tpu_custom_call.1} parent=1 // pred_check
      _
    $region7: #{tpu_custom_call.1} parent=1 // pred_check_branch
      %27 = sbr.rel (0) target = $region9
    $region8: #{tpu_custom_call.1} parent=1 // pred_region
      %29 = vsyncadd [#allocation6], 0
      %s30 = sshll.u32 %s1, 4
      %s31 = int_to_ptr.hbm [resolvable:$true] %s30
      %s32 = sshll.u32 [#allocation5], 4
      %s33 = int_to_ptr.vmem [resolvable:$true] %s32
      %38 = dma.hbm_to_vmem [thread:$0]  %s31, 2048, %s33, [#allocation6], 128, 128, 8
    $region9: #{tpu_custom_call.1} parent=1 // pred_fallthru
      _
    // Predicated region
    $region10: #{tpu_custom_call.1} parent=1 // pred_check
      _
    $region11: #{tpu_custom_call.1} parent=1 // pred_check_branch
      %40 = sbr.rel (0) target = $region13
    $region12: #{tpu_custom_call.1} parent=1 // pred_region
      %42 = vsyncadd [#allocation6], 0
      %s43 = sshll.u32 %s2, 4
      %s44 = int_to_ptr.hbm [resolvable:$true] %s43
      %s45 = sshll.u32 [#allocation7], 4
      %s46 = int_to_ptr.vmem [resolvable:$true] %s45
      %51 = dma.hbm_to_vmem [thread:$0]  %s44, 6144, %s46, [#allocation6], 128, 128, 8
    $region13: #{tpu_custom_call.1} parent=1 // pred_fallthru
      _
    // Predicated region
    $region14: #{tpu_custom_call.1} parent=1 // pred_check
      _
    $region15: #{tpu_custom_call.1} parent=1 // pred_check_branch
      %53 = sbr.rel (0) target = $region17
    $region16: #{tpu_custom_call.1} parent=1 // pred_region
      %55 = vsyncadd [#allocation9], 0
      %s56 = sshll.u32 %s3, 4
      %s57 = int_to_ptr.hbm [resolvable:$true] %s56
      %s58 = sshll.u32 [#allocation8], 4
      %s59 = int_to_ptr.vmem [resolvable:$true] %s58
      %64 = dma.hbm_to_vmem [thread:$0]  %s57, 48, %s59, [#allocation9], 16, 16, 1
    $region17: #{tpu_custom_call.1} parent=1 // pred_fallthru
      _
    // Predicated region
    $region18: #{tpu_custom_call.1} parent=1 // pred_check
      _
    $region19: #{tpu_custom_call.1} parent=1 // pred_check_branch
      %66 = sbr.rel (0) target = $region21
    $region20: #{tpu_custom_call.1} parent=1 // pred_region
      %68 = dma.done [#allocation3], 6144
    $region21: #{tpu_custom_call.1} parent=1 // pred_fallthru
      _
    // Predicated region
    $region22: #{tpu_custom_call.1} parent=1 // pred_check
      _
    $region23: #{tpu_custom_call.1} parent=1 // pred_check_branch
      %70 = sbr.rel (0) target = $region25
    $region24: #{tpu_custom_call.1} parent=1 // pred_region
      %72 = dma.done [#allocation6], 2048
    $region25: #{tpu_custom_call.1} parent=1 // pred_fallthru
      _
    // Predicated region
    $region26: #{tpu_custom_call.1} parent=1 // pred_check
      _
    $region27: #{tpu_custom_call.1} parent=1 // pred_check_branch
      %74 = sbr.rel (0) target = $region29
    $region28: #{tpu_custom_call.1} parent=1 // pred_region
      %76 = dma.done [#allocation6], 6144
    $region29: #{tpu_custom_call.1} parent=1 // pred_fallthru
      _
    // Predicated region
    $region30: #{tpu_custom_call.1} parent=1 // pred_check
      _
    $region31: #{tpu_custom_call.1} parent=1 // pred_check_branch
      %78 = sbr.rel (0) target = $region33
    $region32: #{tpu_custom_call.1} parent=1 // pred_region
      %80 = dma.done [#allocation9], 48
    $region33: #{tpu_custom_call.1} parent=1 // pred_fallthru
      _
    %v81 = vld [vmem:[#allocation5] sm:$0xff]
    %v82 = vld [vmem:[#allocation5 + $0x8] sm:$0xff]
    %v83 = vld [vmem:[#allocation5 + $0x10] sm:$0xff]
    %v84 = vld [vmem:[#allocation5 + $0x18] sm:$0xff]
    %v85 = vld [vmem:[#allocation5 + $0x20] sm:$0xff]
    %v86 = vld [vmem:[#allocation5 + $0x28] sm:$0xff]
    %v87 = vld [vmem:[#allocation5 + $0x30] sm:$0xff]
    %v88 = vld [vmem:[#allocation5 + $0x38] sm:$0xff]
    %v89 = vld [vmem:[#allocation5 + $0x40] sm:$0xff]
    %v90 = vld [vmem:[#allocation5 + $0x48] sm:$0xff]
    %v91 = vld [vmem:[#allocation5 + $0x50] sm:$0xff]
    %v92 = vld [vmem:[#allocation5 + $0x58] sm:$0xff]
    %v93 = vld [vmem:[#allocation5 + $0x60] sm:$0xff]
    %v94 = vld [vmem:[#allocation5 + $0x68] sm:$0xff]
    %v95 = vld [vmem:[#allocation5 + $0x70] sm:$0xff]
    %v96 = vld [vmem:[#allocation5 + $0x78] sm:$0xff]
    %v97 = vld [vmem:[#allocation2] sm:$0xff]
    %v98 = vld [vmem:[#allocation2 + $0x8] sm:$0xff]
    %v99 = vld [vmem:[#allocation2 + $0x10] sm:$0xff]
    %v100 = vld [vmem:[#allocation2 + $0x18] sm:$0xff]
    %v101 = vld [vmem:[#allocation2 + $0x20] sm:$0xff]
    %v102 = vld [vmem:[#allocation2 + $0x28] sm:$0xff]
    %v103 = vld [vmem:[#allocation2 + $0x30] sm:$0xff]
    %v104 = vld [vmem:[#allocation2 + $0x38] sm:$0xff]
    %v105 = vld [vmem:[#allocation2 + $0x40] sm:$0xff]
    %v106 = vld [vmem:[#allocation2 + $0x48] sm:$0xff]
    %v107 = vld [vmem:[#allocation2 + $0x50] sm:$0xff]
    %v108 = vld [vmem:[#allocation2 + $0x58] sm:$0xff]
    %v109 = vld [vmem:[#allocation2 + $0x60] sm:$0xff]
    %v110 = vld [vmem:[#allocation2 + $0x68] sm:$0xff]
    %v111 = vld [vmem:[#allocation2 + $0x70] sm:$0xff]
    %v112 = vld [vmem:[#allocation2 + $0x78] sm:$0xff]
    %113 = vmatpush.msra.mxu0 %v96
    %114 = vmatpush.msra.mxu0 %v95
    %115 = vmatpush.msra.mxu0 %v94
    %116 = vmatpush.msra.mxu0 %v93
    %117 = vmatpush.msra.mxu0 %v92
    %118 = vmatpush.msra.mxu0 %v91
    %119 = vmatpush.msra.mxu0 %v90
    %120 = vmatpush.msra.mxu0 %v89
    %121 = vmatpush.msra.mxu0 %v88
    %122 = vmatpush.msra.mxu0 %v87
    %123 = vmatpush.msra.mxu0 %v86
    %124 = vmatpush.msra.mxu0 %v85
    %125 = vmatpush.msra.mxu0 %v84
    %126 = vmatpush.msra.mxu0 %v83
    %127 = vmatpush.msra.mxu0 %v82
    %128 = vmatpush.msra.mxu0 %v81
    %129 = vmatmul.f32.gmra.mxu0 %v97
    %v130 = vpop.f32.mrf.mxu0
    %v131 = vadd.f32 0.0, %v130
    %132 = vmatmul.f32.gmra.mxu0 %v98
    %v133 = vpop.f32.mrf.mxu0
    %v134 = vadd.f32 0.0, %v133
    %135 = vmatmul.f32.gmra.mxu0 %v99
    %v136 = vpop.f32.mrf.mxu0
    %v137 = vadd.f32 0.0, %v136
    %138 = vmatmul.f32.gmra.mxu0 %v100
    %v139 = vpop.f32.mrf.mxu0
    %v140 = vadd.f32 0.0, %v139
    %141 = vmatmul.f32.gmra.mxu0 %v101
    %v142 = vpop.f32.mrf.mxu0
    %v143 = vadd.f32 0.0, %v142
    %144 = vmatmul.f32.gmra.mxu0 %v102
    %v145 = vpop.f32.mrf.mxu0
    %v146 = vadd.f32 0.0, %v145
    %147 = vmatmul.f32.gmra.mxu0 %v103
    %v148 = vpop.f32.mrf.mxu0
    %v149 = vadd.f32 0.0, %v148
    %150 = vmatmul.f32.gmra.mxu0 %v104
    %v151 = vpop.f32.mrf.mxu0
    %v152 = vadd.f32 0.0, %v151
    %153 = vmatmul.f32.gmra.mxu0 %v105
    %v154 = vpop.f32.mrf.mxu0
    %v155 = vadd.f32 0.0, %v154
    %156 = vmatmul.f32.gmra.mxu0 %v106
    %v157 = vpop.f32.mrf.mxu0
    %v158 = vadd.f32 0.0, %v157
    %159 = vmatmul.f32.gmra.mxu0 %v107
    %v160 = vpop.f32.mrf.mxu0
    %v161 = vadd.f32 0.0, %v160
    %162 = vmatmul.f32.gmra.mxu0 %v108
    %v163 = vpop.f32.mrf.mxu0
    %v164 = vadd.f32 0.0, %v163
    %165 = vmatmul.f32.gmra.mxu0 %v109
    %v166 = vpop.f32.mrf.mxu0
    %v167 = vadd.f32 0.0, %v166
    %168 = vmatmul.f32.gmra.mxu0 %v110
    %v169 = vpop.f32.mrf.mxu0
    %v170 = vadd.f32 0.0, %v169
    %171 = vmatmul.f32.gmra.mxu0 %v111
    %v172 = vpop.f32.mrf.mxu0
    %v173 = vadd.f32 0.0, %v172
    %174 = vmatmul.f32.gmra.mxu0 %v112
    %v175 = vpop.f32.mrf.mxu0
    %v176 = vadd.f32 0.0, %v175
    %177 = vdwg.mxu0
    %178 = vrot.lane.b32.xlu0 %v131, 64
    %v179 = vpop.permute.xlu0 %178
    %180 = vrot.lane.b32.xlu0 %v134, 64
    %v181 = vpop.permute.xlu0 %180
    %182 = vrot.lane.b32.xlu0 %v137, 64
    %v183 = vpop.permute.xlu0 %182
    %184 = vrot.lane.b32.xlu0 %v140, 64
    %v185 = vpop.permute.xlu0 %184
    %186 = vrot.lane.b32.xlu0 %v143, 64
    %v187 = vpop.permute.xlu0 %186
    %188 = vrot.lane.b32.xlu0 %v146, 64
    %v189 = vpop.permute.xlu0 %188
    %190 = vrot.lane.b32.xlu0 %v149, 64
    %v191 = vpop.permute.xlu0 %190
    %192 = vrot.lane.b32.xlu0 %v152, 64
    %v193 = vpop.permute.xlu0 %192
    %194 = vrot.lane.b32.xlu0 %v155, 64
    %v195 = vpop.permute.xlu0 %194
    %196 = vrot.lane.b32.xlu0 %v158, 64
    %v197 = vpop.permute.xlu0 %196
    %198 = vrot.lane.b32.xlu0 %v161, 64
    %v199 = vpop.permute.xlu0 %198
    %200 = vrot.lane.b32.xlu0 %v164, 64
    %v201 = vpop.permute.xlu0 %200
    %202 = vrot.lane.b32.xlu0 %v167, 64
    %v203 = vpop.permute.xlu0 %202
    %204 = vrot.lane.b32.xlu0 %v170, 64
    %v205 = vpop.permute.xlu0 %204
    %206 = vrot.lane.b32.xlu0 %v173, 64
    %v207 = vpop.permute.xlu0 %206
    %208 = vrot.lane.b32.xlu0 %v176, 64
    %v209 = vpop.permute.xlu0 %208
    %v210 = vadd.f32 %v81, %v179
    %v211 = vadd.f32 %v82, %v181
    %v212 = vadd.f32 %v83, %v183
    %v213 = vadd.f32 %v84, %v185
    %v214 = vadd.f32 %v85, %v187
    %v215 = vadd.f32 %v86, %v189
    %v216 = vadd.f32 %v87, %v191
    %v217 = vadd.f32 %v88, %v193
    %v218 = vadd.f32 %v89, %v195
    %v219 = vadd.f32 %v90, %v197
    %v220 = vadd.f32 %v91, %v199
    %v221 = vadd.f32 %v92, %v201
    %v222 = vadd.f32 %v93, %v203
    %v223 = vadd.f32 %v94, %v205
    %v224 = vadd.f32 %v95, %v207
    %v225 = vadd.f32 %v96, %v209
    %v226 = vld [vmem:[#allocation7] sm:$0xff]
    %v227 = vld [vmem:[#allocation7 + $0x8] sm:$0xff]
    %v228 = vld [vmem:[#allocation7 + $0x10] sm:$0xff]
    %v229 = vld [vmem:[#allocation7 + $0x18] sm:$0xff]
    %v230 = vld [vmem:[#allocation7 + $0x20] sm:$0xff]
    %v231 = vld [vmem:[#allocation7 + $0x28] sm:$0xff]
    %v232 = vld [vmem:[#allocation7 + $0x30] sm:$0xff]
    %v233 = vld [vmem:[#allocation7 + $0x38] sm:$0xff]
    %v234 = vld [vmem:[#allocation7 + $0x40] sm:$0xff]
    %v235 = vld [vmem:[#allocation7 + $0x48] sm:$0xff]
    %v236 = vld [vmem:[#allocation7 + $0x50] sm:$0xff]
    %v237 = vld [vmem:[#allocation7 + $0x58] sm:$0xff]
    %v238 = vld [vmem:[#allocation7 + $0x60] sm:$0xff]
    %v239 = vld [vmem:[#allocation7 + $0x68] sm:$0xff]
    %v240 = vld [vmem:[#allocation7 + $0x70] sm:$0xff]
    %v241 = vld [vmem:[#allocation7 + $0x78] sm:$0xff]
    %v242 = vld [vmem:[#allocation8] sm:$0x1]
    %v244 = vperm.slane %v242, 0
    %246 = vmatpush.msra.mxu0 %v241
    %247 = vmatpush.msra.mxu0 %v240
    %248 = vmatpush.msra.mxu0 %v239
    %249 = vmatpush.msra.mxu0 %v238
    %250 = vmatpush.msra.mxu0 %v237
    %251 = vmatpush.msra.mxu0 %v236
    %252 = vmatpush.msra.mxu0 %v235
    %253 = vmatpush.msra.mxu0 %v234
    %254 = vmatpush.msra.mxu0 %v233
    %255 = vmatpush.msra.mxu0 %v232
    %256 = vmatpush.msra.mxu0 %v231
    %257 = vmatpush.msra.mxu0 %v230
    %258 = vmatpush.msra.mxu0 %v229
    %259 = vmatpush.msra.mxu0 %v228
    %260 = vmatpush.msra.mxu0 %v227
    %261 = vmatpush.msra.mxu0 %v226
    %262 = vmatmul.f32.gmra.mxu0 %v210
    %v263 = vpop.f32.mrf.mxu0
    %v264 = vadd.f32 %v244, %v263
    %265 = vmatmul.f32.gmra.mxu0 %v211
    %v266 = vpop.f32.mrf.mxu0
    %v267 = vadd.f32 %v244, %v266
    %268 = vmatmul.f32.gmra.mxu0 %v212
    %v269 = vpop.f32.mrf.mxu0
    %v270 = vadd.f32 %v244, %v269
    %271 = vmatmul.f32.gmra.mxu0 %v213
    %v272 = vpop.f32.mrf.mxu0
    %v273 = vadd.f32 %v244, %v272
    %274 = vmatmul.f32.gmra.mxu0 %v214
    %v275 = vpop.f32.mrf.mxu0
    %v276 = vadd.f32 %v244, %v275
    %277 = vmatmul.f32.gmra.mxu0 %v215
    %v278 = vpop.f32.mrf.mxu0
    %v279 = vadd.f32 %v244, %v278
    %280 = vmatmul.f32.gmra.mxu0 %v216
    %v281 = vpop.f32.mrf.mxu0
    %v282 = vadd.f32 %v244, %v281
    %283 = vmatmul.f32.gmra.mxu0 %v217
    %v284 = vpop.f32.mrf.mxu0
    %v285 = vadd.f32 %v244, %v284
    %286 = vmatmul.f32.gmra.mxu0 %v218
    %v287 = vpop.f32.mrf.mxu0
    %v288 = vadd.f32 %v244, %v287
    %289 = vmatmul.f32.gmra.mxu0 %v219
    %v290 = vpop.f32.mrf.mxu0
    %v291 = vadd.f32 %v244, %v290
    %292 = vmatmul.f32.gmra.mxu0 %v220
    %v293 = vpop.f32.mrf.mxu0
    %v294 = vadd.f32 %v244, %v293
    %295 = vmatmul.f32.gmra.mxu0 %v221
    %v296 = vpop.f32.mrf.mxu0
    %v297 = vadd.f32 %v244, %v296
    %298 = vmatmul.f32.gmra.mxu0 %v222
    %v299 = vpop.f32.mrf.mxu0
    %v300 = vadd.f32 %v244, %v299
    %301 = vmatmul.f32.gmra.mxu0 %v223
    %v302 = vpop.f32.mrf.mxu0
    %v303 = vadd.f32 %v244, %v302
    %304 = vmatmul.f32.gmra.mxu0 %v224
    %v305 = vpop.f32.mrf.mxu0
    %v306 = vadd.f32 %v244, %v305
    %307 = vmatmul.f32.gmra.mxu0 %v225
    %v308 = vpop.f32.mrf.mxu0
    %v309 = vadd.f32 %v244, %v308
    %310 = vdwg.mxu0
    %v311 = vmax.f32 %v264, 0.0
    %v312 = vmax.f32 %v267, 0.0
    %v313 = vmax.f32 %v270, 0.0
    %v314 = vmax.f32 %v273, 0.0
    %v315 = vmax.f32 %v276, 0.0
    %v316 = vmax.f32 %v279, 0.0
    %v317 = vmax.f32 %v282, 0.0
    %v318 = vmax.f32 %v285, 0.0
    %v319 = vmax.f32 %v288, 0.0
    %v320 = vmax.f32 %v291, 0.0
    %v321 = vmax.f32 %v294, 0.0
    %v322 = vmax.f32 %v297, 0.0
    %v323 = vmax.f32 %v300, 0.0
    %v324 = vmax.f32 %v303, 0.0
    %v325 = vmax.f32 %v306, 0.0
    %v326 = vmax.f32 %v309, 0.0
    %s327 = scalar_lea.vmem [#allocation2], 128
    %v328 = vld [vmem:[%s327] sm:$0xff]
    %v329 = vld [vmem:[%s327 + $0x8] sm:$0xff]
    %v330 = vld [vmem:[%s327 + $0x10] sm:$0xff]
    %v331 = vld [vmem:[%s327 + $0x18] sm:$0xff]
    %v332 = vld [vmem:[%s327 + $0x20] sm:$0xff]
    %v333 = vld [vmem:[%s327 + $0x28] sm:$0xff]
    %v334 = vld [vmem:[%s327 + $0x30] sm:$0xff]
    %v335 = vld [vmem:[%s327 + $0x38] sm:$0xff]
    %v336 = vld [vmem:[%s327 + $0x40] sm:$0xff]
    %v337 = vld [vmem:[%s327 + $0x48] sm:$0xff]
    %v338 = vld [vmem:[%s327 + $0x50] sm:$0xff]
    %v339 = vld [vmem:[%s327 + $0x58] sm:$0xff]
    %v340 = vld [vmem:[%s327 + $0x60] sm:$0xff]
    %v341 = vld [vmem:[%s327 + $0x68] sm:$0xff]
    %v342 = vld [vmem:[%s327 + $0x70] sm:$0xff]
    %v343 = vld [vmem:[%s327 + $0x78] sm:$0xff]
    %344 = vmatpush.msra.mxu0 %v326
    %345 = vmatpush.msra.mxu0 %v325
    %346 = vmatpush.msra.mxu0 %v324
    %347 = vmatpush.msra.mxu0 %v323
    %348 = vmatpush.msra.mxu0 %v322
    %349 = vmatpush.msra.mxu0 %v321
    %350 = vmatpush.msra.mxu0 %v320
    %351 = vmatpush.msra.mxu0 %v319
    %352 = vmatpush.msra.mxu0 %v318
    %353 = vmatpush.msra.mxu0 %v317
    %354 = vmatpush.msra.mxu0 %v316
    %355 = vmatpush.msra.mxu0 %v315
    %356 = vmatpush.msra.mxu0 %v314
    %357 = vmatpush.msra.mxu0 %v313
    %358 = vmatpush.msra.mxu0 %v312
    %359 = vmatpush.msra.mxu0 %v311
    %360 = vmatmul.f32.gmra.mxu0 %v328
    %v361 = vpop.f32.mrf.mxu0
    %v362 = vadd.f32 0.0, %v361
    %363 = vmatmul.f32.gmra.mxu0 %v329
    %v364 = vpop.f32.mrf.mxu0
    %v365 = vadd.f32 0.0, %v364
    %366 = vmatmul.f32.gmra.mxu0 %v330
    %v367 = vpop.f32.mrf.mxu0
    %v368 = vadd.f32 0.0, %v367
    %369 = vmatmul.f32.gmra.mxu0 %v331
    %v370 = vpop.f32.mrf.mxu0
    %v371 = vadd.f32 0.0, %v370
    %372 = vmatmul.f32.gmra.mxu0 %v332
    %v373 = vpop.f32.mrf.mxu0
    %v374 = vadd.f32 0.0, %v373
    %375 = vmatmul.f32.gmra.mxu0 %v333
    %v376 = vpop.f32.mrf.mxu0
    %v377 = vadd.f32 0.0, %v376
    %378 = vmatmul.f32.gmra.mxu0 %v334
    %v379 = vpop.f32.mrf.mxu0
    %v380 = vadd.f32 0.0, %v379
    %381 = vmatmul.f32.gmra.mxu0 %v335
    %v382 = vpop.f32.mrf.mxu0
    %v383 = vadd.f32 0.0, %v382
    %384 = vmatmul.f32.gmra.mxu0 %v336
    %v385 = vpop.f32.mrf.mxu0
    %v386 = vadd.f32 0.0, %v385
    %387 = vmatmul.f32.gmra.mxu0 %v337
    %v388 = vpop.f32.mrf.mxu0
    %v389 = vadd.f32 0.0, %v388
    %390 = vmatmul.f32.gmra.mxu0 %v338
    %v391 = vpop.f32.mrf.mxu0
    %v392 = vadd.f32 0.0, %v391
    %393 = vmatmul.f32.gmra.mxu0 %v339
    %v394 = vpop.f32.mrf.mxu0
    %v395 = vadd.f32 0.0, %v394
    %396 = vmatmul.f32.gmra.mxu0 %v340
    %v397 = vpop.f32.mrf.mxu0
    %v398 = vadd.f32 0.0, %v397
    %399 = vmatmul.f32.gmra.mxu0 %v341
    %v400 = vpop.f32.mrf.mxu0
    %v401 = vadd.f32 0.0, %v400
    %402 = vmatmul.f32.gmra.mxu0 %v342
    %v403 = vpop.f32.mrf.mxu0
    %v404 = vadd.f32 0.0, %v403
    %405 = vmatmul.f32.gmra.mxu0 %v343
    %v406 = vpop.f32.mrf.mxu0
    %v407 = vadd.f32 0.0, %v406
    %408 = vdwg.mxu0
    %409 = vrot.lane.b32.xlu0 %v362, 64
    %v410 = vpop.permute.xlu0 %409
    %411 = vrot.lane.b32.xlu0 %v365, 64
    %v412 = vpop.permute.xlu0 %411
    %413 = vrot.lane.b32.xlu0 %v368, 64
    %v414 = vpop.permute.xlu0 %413
    %415 = vrot.lane.b32.xlu0 %v371, 64
    %v416 = vpop.permute.xlu0 %415
    %417 = vrot.lane.b32.xlu0 %v374, 64
    %v418 = vpop.permute.xlu0 %417
    %419 = vrot.lane.b32.xlu0 %v377, 64
    %v420 = vpop.permute.xlu0 %419
    %421 = vrot.lane.b32.xlu0 %v380, 64
    %v422 = vpop.permute.xlu0 %421
    %423 = vrot.lane.b32.xlu0 %v383, 64
    %v424 = vpop.permute.xlu0 %423
    %425 = vrot.lane.b32.xlu0 %v386, 64
    %v426 = vpop.permute.xlu0 %425
    %427 = vrot.lane.b32.xlu0 %v389, 64
    %v428 = vpop.permute.xlu0 %427
    %429 = vrot.lane.b32.xlu0 %v392, 64
    %v430 = vpop.permute.xlu0 %429
    %431 = vrot.lane.b32.xlu0 %v395, 64
    %v432 = vpop.permute.xlu0 %431
    %433 = vrot.lane.b32.xlu0 %v398, 64
    %v434 = vpop.permute.xlu0 %433
    %435 = vrot.lane.b32.xlu0 %v401, 64
    %v436 = vpop.permute.xlu0 %435
    %437 = vrot.lane.b32.xlu0 %v404, 64
    %v438 = vpop.permute.xlu0 %437
    %439 = vrot.lane.b32.xlu0 %v407, 64
    %v440 = vpop.permute.xlu0 %439
    %v441 = vadd.f32 %v311, %v410
    %v442 = vadd.f32 %v312, %v412
    %v443 = vadd.f32 %v313, %v414
    %v444 = vadd.f32 %v314, %v416
    %v445 = vadd.f32 %v315, %v418
    %v446 = vadd.f32 %v316, %v420
    %v447 = vadd.f32 %v317, %v422
    %v448 = vadd.f32 %v318, %v424
    %v449 = vadd.f32 %v319, %v426
    %v450 = vadd.f32 %v320, %v428
    %v451 = vadd.f32 %v321, %v430
    %v452 = vadd.f32 %v322, %v432
    %v453 = vadd.f32 %v323, %v434
    %v454 = vadd.f32 %v324, %v436
    %v455 = vadd.f32 %v325, %v438
    %v456 = vadd.f32 %v326, %v440
    %s457 = scalar_lea.vmem [#allocation7], 128
    %v458 = vld [vmem:[%s457] sm:$0xff]
    %v459 = vld [vmem:[%s457 + $0x8] sm:$0xff]
    %v460 = vld [vmem:[%s457 + $0x10] sm:$0xff]
    %v461 = vld [vmem:[%s457 + $0x18] sm:$0xff]
    %v462 = vld [vmem:[%s457 + $0x20] sm:$0xff]
    %v463 = vld [vmem:[%s457 + $0x28] sm:$0xff]
    %v464 = vld [vmem:[%s457 + $0x30] sm:$0xff]
    %v465 = vld [vmem:[%s457 + $0x38] sm:$0xff]
    %v466 = vld [vmem:[%s457 + $0x40] sm:$0xff]
    %v467 = vld [vmem:[%s457 + $0x48] sm:$0xff]
    %v468 = vld [vmem:[%s457 + $0x50] sm:$0xff]
    %v469 = vld [vmem:[%s457 + $0x58] sm:$0xff]
    %v470 = vld [vmem:[%s457 + $0x60] sm:$0xff]
    %v471 = vld [vmem:[%s457 + $0x68] sm:$0xff]
    %v472 = vld [vmem:[%s457 + $0x70] sm:$0xff]
    %v473 = vld [vmem:[%s457 + $0x78] sm:$0xff]
    %s474 = scalar_lea.vmem [#allocation8], 1
    %v475 = vld [vmem:[%s474] sm:$0x1]
    %v477 = vperm.slane %v475, 0
    %479 = vmatpush.msra.mxu0 %v473
    %480 = vmatpush.msra.mxu0 %v472
    %481 = vmatpush.msra.mxu0 %v471
    %482 = vmatpush.msra.mxu0 %v470
    %483 = vmatpush.msra.mxu0 %v469
    %484 = vmatpush.msra.mxu0 %v468
    %485 = vmatpush.msra.mxu0 %v467
    %486 = vmatpush.msra.mxu0 %v466
    %487 = vmatpush.msra.mxu0 %v465
    %488 = vmatpush.msra.mxu0 %v464
    %489 = vmatpush.msra.mxu0 %v463
    %490 = vmatpush.msra.mxu0 %v462
    %491 = vmatpush.msra.mxu0 %v461
    %492 = vmatpush.msra.mxu0 %v460
    %493 = vmatpush.msra.mxu0 %v459
    %494 = vmatpush.msra.mxu0 %v458
    %495 = vmatmul.f32.gmra.mxu0 %v441
    %v496 = vpop.f32.mrf.mxu0
    %v497 = vadd.f32 %v477, %v496
    %498 = vmatmul.f32.gmra.mxu0 %v442
    %v499 = vpop.f32.mrf.mxu0
    %v500 = vadd.f32 %v477, %v499
    %501 = vmatmul.f32.gmra.mxu0 %v443
    %v502 = vpop.f32.mrf.mxu0
    %v503 = vadd.f32 %v477, %v502
    %504 = vmatmul.f32.gmra.mxu0 %v444
    %v505 = vpop.f32.mrf.mxu0
    %v506 = vadd.f32 %v477, %v505
    %507 = vmatmul.f32.gmra.mxu0 %v445
    %v508 = vpop.f32.mrf.mxu0
    %v509 = vadd.f32 %v477, %v508
    %510 = vmatmul.f32.gmra.mxu0 %v446
    %v511 = vpop.f32.mrf.mxu0
    %v512 = vadd.f32 %v477, %v511
    %513 = vmatmul.f32.gmra.mxu0 %v447
    %v514 = vpop.f32.mrf.mxu0
    %v515 = vadd.f32 %v477, %v514
    %516 = vmatmul.f32.gmra.mxu0 %v448
    %v517 = vpop.f32.mrf.mxu0
    %v518 = vadd.f32 %v477, %v517
    %519 = vmatmul.f32.gmra.mxu0 %v449
    %v520 = vpop.f32.mrf.mxu0
    %v521 = vadd.f32 %v477, %v520
    %522 = vmatmul.f32.gmra.mxu0 %v450
    %v523 = vpop.f32.mrf.mxu0
    %v524 = vadd.f32 %v477, %v523
    %525 = vmatmul.f32.gmra.mxu0 %v451
    %v526 = vpop.f32.mrf.mxu0
    %v527 = vadd.f32 %v477, %v526
    %528 = vmatmul.f32.gmra.mxu0 %v452
    %v529 = vpop.f32.mrf.mxu0
    %v530 = vadd.f32 %v477, %v529
    %531 = vmatmul.f32.gmra.mxu0 %v453
    %v532 = vpop.f32.mrf.mxu0
    %v533 = vadd.f32 %v477, %v532
    %534 = vmatmul.f32.gmra.mxu0 %v454
    %v535 = vpop.f32.mrf.mxu0
    %v536 = vadd.f32 %v477, %v535
    %537 = vmatmul.f32.gmra.mxu0 %v455
    %v538 = vpop.f32.mrf.mxu0
    %v539 = vadd.f32 %v477, %v538
    %540 = vmatmul.f32.gmra.mxu0 %v456
    %v541 = vpop.f32.mrf.mxu0
    %v542 = vadd.f32 %v477, %v541
    %543 = vdwg.mxu0
    %v544 = vmax.f32 %v497, 0.0
    %v545 = vmax.f32 %v500, 0.0
    %v546 = vmax.f32 %v503, 0.0
    %v547 = vmax.f32 %v506, 0.0
    %v548 = vmax.f32 %v509, 0.0
    %v549 = vmax.f32 %v512, 0.0
    %v550 = vmax.f32 %v515, 0.0
    %v551 = vmax.f32 %v518, 0.0
    %v552 = vmax.f32 %v521, 0.0
    %v553 = vmax.f32 %v524, 0.0
    %v554 = vmax.f32 %v527, 0.0
    %v555 = vmax.f32 %v530, 0.0
    %v556 = vmax.f32 %v533, 0.0
    %v557 = vmax.f32 %v536, 0.0
    %v558 = vmax.f32 %v539, 0.0
    %v559 = vmax.f32 %v542, 0.0
    %s560 = scalar_lea.vmem [#allocation2], 256
    %v561 = vld [vmem:[%s560] sm:$0xff]
    %v562 = vld [vmem:[%s560 + $0x8] sm:$0xff]
    %v563 = vld [vmem:[%s560 + $0x10] sm:$0xff]
    %v564 = vld [vmem:[%s560 + $0x18] sm:$0xff]
    %v565 = vld [vmem:[%s560 + $0x20] sm:$0xff]
    %v566 = vld [vmem:[%s560 + $0x28] sm:$0xff]
    %v567 = vld [vmem:[%s560 + $0x30] sm:$0xff]
    %v568 = vld [vmem:[%s560 + $0x38] sm:$0xff]
    %v569 = vld [vmem:[%s560 + $0x40] sm:$0xff]
    %v570 = vld [vmem:[%s560 + $0x48] sm:$0xff]
    %v571 = vld [vmem:[%s560 + $0x50] sm:$0xff]
    %v572 = vld [vmem:[%s560 + $0x58] sm:$0xff]
    %v573 = vld [vmem:[%s560 + $0x60] sm:$0xff]
    %v574 = vld [vmem:[%s560 + $0x68] sm:$0xff]
    %v575 = vld [vmem:[%s560 + $0x70] sm:$0xff]
    %v576 = vld [vmem:[%s560 + $0x78] sm:$0xff]
    %577 = vmatpush.msra.mxu0 %v559
    %578 = vmatpush.msra.mxu0 %v558
    %579 = vmatpush.msra.mxu0 %v557
    %580 = vmatpush.msra.mxu0 %v556
    %581 = vmatpush.msra.mxu0 %v555
    %582 = vmatpush.msra.mxu0 %v554
    %583 = vmatpush.msra.mxu0 %v553
    %584 = vmatpush.msra.mxu0 %v552
    %585 = vmatpush.msra.mxu0 %v551
    %586 = vmatpush.msra.mxu0 %v550
    %587 = vmatpush.msra.mxu0 %v549
    %588 = vmatpush.msra.mxu0 %v548
    %589 = vmatpush.msra.mxu0 %v547
    %590 = vmatpush.msra.mxu0 %v546
    %591 = vmatpush.msra.mxu0 %v545
    %592 = vmatpush.msra.mxu0 %v544
    %593 = vmatmul.f32.gmra.mxu0 %v561
    %v594 = vpop.f32.mrf.mxu0
    %v595 = vadd.f32 0.0, %v594
    %596 = vmatmul.f32.gmra.mxu0 %v562
    %v597 = vpop.f32.mrf.mxu0
    %v598 = vadd.f32 0.0, %v597
    %599 = vmatmul.f32.gmra.mxu0 %v563
    %v600 = vpop.f32.mrf.mxu0
    %v601 = vadd.f32 0.0, %v600
    %602 = vmatmul.f32.gmra.mxu0 %v564
    %v603 = vpop.f32.mrf.mxu0
    %v604 = vadd.f32 0.0, %v603
    %605 = vmatmul.f32.gmra.mxu0 %v565
    %v606 = vpop.f32.mrf.mxu0
    %v607 = vadd.f32 0.0, %v606
    %608 = vmatmul.f32.gmra.mxu0 %v566
    %v609 = vpop.f32.mrf.mxu0
    %v610 = vadd.f32 0.0, %v609
    %611 = vmatmul.f32.gmra.mxu0 %v567
    %v612 = vpop.f32.mrf.mxu0
    %v613 = vadd.f32 0.0, %v612
    %614 = vmatmul.f32.gmra.mxu0 %v568
    %v615 = vpop.f32.mrf.mxu0
    %v616 = vadd.f32 0.0, %v615
    %617 = vmatmul.f32.gmra.mxu0 %v569
    %v618 = vpop.f32.mrf.mxu0
    %v619 = vadd.f32 0.0, %v618
    %620 = vmatmul.f32.gmra.mxu0 %v570
    %v621 = vpop.f32.mrf.mxu0
    %v622 = vadd.f32 0.0, %v621
    %623 = vmatmul.f32.gmra.mxu0 %v571
    %v624 = vpop.f32.mrf.mxu0
    %v625 = vadd.f32 0.0, %v624
    %626 = vmatmul.f32.gmra.mxu0 %v572
    %v627 = vpop.f32.mrf.mxu0
    %v628 = vadd.f32 0.0, %v627
    %629 = vmatmul.f32.gmra.mxu0 %v573
    %v630 = vpop.f32.mrf.mxu0
    %v631 = vadd.f32 0.0, %v630
    %632 = vmatmul.f32.gmra.mxu0 %v574
    %v633 = vpop.f32.mrf.mxu0
    %v634 = vadd.f32 0.0, %v633
    %635 = vmatmul.f32.gmra.mxu0 %v575
    %v636 = vpop.f32.mrf.mxu0
    %v637 = vadd.f32 0.0, %v636
    %638 = vmatmul.f32.gmra.mxu0 %v576
    %v639 = vpop.f32.mrf.mxu0
    %v640 = vadd.f32 0.0, %v639
    %641 = vdwg.mxu0
    %642 = vrot.lane.b32.xlu0 %v595, 64
    %v643 = vpop.permute.xlu0 %642
    %644 = vrot.lane.b32.xlu0 %v598, 64
    %v645 = vpop.permute.xlu0 %644
    %646 = vrot.lane.b32.xlu0 %v601, 64
    %v647 = vpop.permute.xlu0 %646
    %648 = vrot.lane.b32.xlu0 %v604, 64
    %v649 = vpop.permute.xlu0 %648
    %650 = vrot.lane.b32.xlu0 %v607, 64
    %v651 = vpop.permute.xlu0 %650
    %652 = vrot.lane.b32.xlu0 %v610, 64
    %v653 = vpop.permute.xlu0 %652
    %654 = vrot.lane.b32.xlu0 %v613, 64
    %v655 = vpop.permute.xlu0 %654
    %656 = vrot.lane.b32.xlu0 %v616, 64
    %v657 = vpop.permute.xlu0 %656
    %658 = vrot.lane.b32.xlu0 %v619, 64
    %v659 = vpop.permute.xlu0 %658
    %660 = vrot.lane.b32.xlu0 %v622, 64
    %v661 = vpop.permute.xlu0 %660
    %662 = vrot.lane.b32.xlu0 %v625, 64
    %v663 = vpop.permute.xlu0 %662
    %664 = vrot.lane.b32.xlu0 %v628, 64
    %v665 = vpop.permute.xlu0 %664
    %666 = vrot.lane.b32.xlu0 %v631, 64
    %v667 = vpop.permute.xlu0 %666
    %668 = vrot.lane.b32.xlu0 %v634, 64
    %v669 = vpop.permute.xlu0 %668
    %670 = vrot.lane.b32.xlu0 %v637, 64
    %v671 = vpop.permute.xlu0 %670
    %672 = vrot.lane.b32.xlu0 %v640, 64
    %v673 = vpop.permute.xlu0 %672
    %v674 = vadd.f32 %v544, %v643
    %v675 = vadd.f32 %v545, %v645
    %v676 = vadd.f32 %v546, %v647
    %v677 = vadd.f32 %v547, %v649
    %v678 = vadd.f32 %v548, %v651
    %v679 = vadd.f32 %v549, %v653
    %v680 = vadd.f32 %v550, %v655
    %v681 = vadd.f32 %v551, %v657
    %v682 = vadd.f32 %v552, %v659
    %v683 = vadd.f32 %v553, %v661
    %v684 = vadd.f32 %v554, %v663
    %v685 = vadd.f32 %v555, %v665
    %v686 = vadd.f32 %v556, %v667
    %v687 = vadd.f32 %v557, %v669
    %v688 = vadd.f32 %v558, %v671
    %v689 = vadd.f32 %v559, %v673
    %s690 = scalar_lea.vmem [#allocation7], 256
    %v691 = vld [vmem:[%s690] sm:$0xff]
    %v692 = vld [vmem:[%s690 + $0x8] sm:$0xff]
    %v693 = vld [vmem:[%s690 + $0x10] sm:$0xff]
    %v694 = vld [vmem:[%s690 + $0x18] sm:$0xff]
    %v695 = vld [vmem:[%s690 + $0x20] sm:$0xff]
    %v696 = vld [vmem:[%s690 + $0x28] sm:$0xff]
    %v697 = vld [vmem:[%s690 + $0x30] sm:$0xff]
    %v698 = vld [vmem:[%s690 + $0x38] sm:$0xff]
    %v699 = vld [vmem:[%s690 + $0x40] sm:$0xff]
    %v700 = vld [vmem:[%s690 + $0x48] sm:$0xff]
    %v701 = vld [vmem:[%s690 + $0x50] sm:$0xff]
    %v702 = vld [vmem:[%s690 + $0x58] sm:$0xff]
    %v703 = vld [vmem:[%s690 + $0x60] sm:$0xff]
    %v704 = vld [vmem:[%s690 + $0x68] sm:$0xff]
    %v705 = vld [vmem:[%s690 + $0x70] sm:$0xff]
    %v706 = vld [vmem:[%s690 + $0x78] sm:$0xff]
    %s707 = scalar_lea.vmem [#allocation8], 2
    %v708 = vld [vmem:[%s707] sm:$0x1]
    %v710 = vperm.slane %v708, 0
    %712 = vmatpush.msra.mxu0 %v706
    %713 = vmatpush.msra.mxu0 %v705
    %714 = vmatpush.msra.mxu0 %v704
    %715 = vmatpush.msra.mxu0 %v703
    %716 = vmatpush.msra.mxu0 %v702
    %717 = vmatpush.msra.mxu0 %v701
    %718 = vmatpush.msra.mxu0 %v700
    %719 = vmatpush.msra.mxu0 %v699
    %720 = vmatpush.msra.mxu0 %v698
    %721 = vmatpush.msra.mxu0 %v697
    %722 = vmatpush.msra.mxu0 %v696
    %723 = vmatpush.msra.mxu0 %v695
    %724 = vmatpush.msra.mxu0 %v694
    %725 = vmatpush.msra.mxu0 %v693
    %726 = vmatpush.msra.mxu0 %v692
    %727 = vmatpush.msra.mxu0 %v691
    %728 = vmatmul.f32.gmra.mxu0 %v674
    %v729 = vpop.f32.mrf.mxu0
    %v730 = vadd.f32 %v710, %v729
    %731 = vmatmul.f32.gmra.mxu0 %v675
    %v732 = vpop.f32.mrf.mxu0
    %v733 = vadd.f32 %v710, %v732
    %734 = vmatmul.f32.gmra.mxu0 %v676
    %v735 = vpop.f32.mrf.mxu0
    %736 = vmatmul.f32.gmra.mxu0 %v677
    %v737 = vpop.f32.mrf.mxu0
    %738 = vmatmul.f32.gmra.mxu0 %v678
    %v739 = vpop.f32.mrf.mxu0
    %740 = vmatmul.f32.gmra.mxu0 %v679
    %v741 = vpop.f32.mrf.mxu0
    %742 = vmatmul.f32.gmra.mxu0 %v680
    %v743 = vpop.f32.mrf.mxu0
    %744 = vmatmul.f32.gmra.mxu0 %v681
    %v745 = vpop.f32.mrf.mxu0
    %746 = vmatmul.f32.gmra.mxu0 %v682
    %v747 = vpop.f32.mrf.mxu0
    %748 = vmatmul.f32.gmra.mxu0 %v683
    %v749 = vpop.f32.mrf.mxu0
    %750 = vmatmul.f32.gmra.mxu0 %v684
    %v751 = vpop.f32.mrf.mxu0
    %752 = vmatmul.f32.gmra.mxu0 %v685
    %v753 = vpop.f32.mrf.mxu0
    %754 = vmatmul.f32.gmra.mxu0 %v686
    %v755 = vpop.f32.mrf.mxu0
    %756 = vmatmul.f32.gmra.mxu0 %v687
    %v757 = vpop.f32.mrf.mxu0
    %758 = vmatmul.f32.gmra.mxu0 %v688
    %v759 = vpop.f32.mrf.mxu0
    %760 = vmatmul.f32.gmra.mxu0 %v689
    %v761 = vpop.f32.mrf.mxu0
    %762 = vdwg.mxu0
    %763 = vst [vmem:[#allocation10] sm:$0xff] %v730
    %764 = vst [vmem:[#allocation10 + $0x8] sm:$0xff] %v733
    // Predicated region
    $region34: #{tpu_custom_call.1} parent=1 // pred_check
      _
    $region35: #{tpu_custom_call.1} parent=1 // pred_check_branch
      %766 = sbr.rel (0) target = $region37
    $region36: #{tpu_custom_call.1} parent=1 // pred_region
      %768 = vsyncadd [#allocation4], 0
      %s769 = sshll.u32 [#allocation10], 4
      %s770 = int_to_ptr.vmem [resolvable:$true] %s769
      %s771 = sshll.u32 %s4, 4
      %s772 = int_to_ptr.hbm [resolvable:$true] %s771
      %777 = dma.vmem_to_hbm [thread:$0]  %s770, 256, %s772, [#allocation4], 128, 128, 8
    $region37: #{tpu_custom_call.1} parent=1 // pred_fallthru
      _
    // Predicated region
    $region38: #{tpu_custom_call.1} parent=1 // pred_check
      _
    $region39: #{tpu_custom_call.1} parent=1 // pred_check_branch
      %779 = sbr.rel (0) target = $region41
    $region40: #{tpu_custom_call.1} parent=1 // pred_region
      %781 = dma.done [#allocation4], 256
    $region41: #{tpu_custom_call.1} parent=1 // pred_fallthru
      _
    %782 = vsyncpa [#allocation3], 1
    %783 = vsyncpa [#allocation6], 1
    %784 = vsyncpa [#allocation9], 1
    %785 = vsyncpa [#allocation4], 1

</llo_original>
